<compile_context>
chip_gen: v7x
topology: tpu7x:2x2x1
jax: 0.10.0
libtpu: 0.0.40
codegen_flags: <defaults>
</compile_context>

<pallas_src>
import math

import jax
import jax.numpy as jnp
from jax.experimental import pallas as pl
from jax.experimental.pallas import tpu as pltpu


# ----------------------------- kernel ---------------------------------------


def _linear_kernel(x_ref, w_ref, b_ref, o_ref):
    """One row-tile of y = x @ W + b (x: (tile, G*c_in), W: (G*c_in, G*c_out))."""
    o_ref[...] = (
        jnp.dot(x_ref[...], w_ref[...], preferred_element_type=jnp.float32)
        + b_ref[...]
    ).astype(o_ref.dtype)


# ----------------------------- grouping helpers ------------------------------


def _round_up(x, m):
    return ((x + m - 1) // m) * m


def _preferred_group(c_in, c_out, max_g=16):
    """Group size G such that (G * c_out) % 128 == 0 (lane-dense output)."""
    if c_out % 128 == 0:
        return 1
    g = 128 // math.gcd(c_out, 128)
    if g > max_g:
        return 1
    # grow G while the grouped input minor dim still fits in one 128-lane vreg row
    while 2 * g <= max_g and 2 * g * c_in <= 128:
        g *= 2
    return g


def _group_params(w, b, G):
    """Block-diagonal weight / tiled bias for G-row grouping."""
    c_in, c_out = w.shape
    w_g = jnp.kron(jnp.eye(G, dtype=w.dtype), w)       # (G*c_in, G*c_out)
    b_g = jnp.tile(b.reshape(1, c_out), (1, G))        # (1, G*c_out)
    return w_g, b_g


def prepare_grouped_params(w, b, max_g=16):
    """Hoisted, build-once grouped params: returns (G, w_g, b_g)."""
    G = _preferred_group(w.shape[0], w.shape[1], max_g)
    w_g, b_g = _group_params(w, b, G)
    return G, w_g, b_g


# ----------------------------- wrapper ---------------------------------------


def extra_msa_embedder_forward(a, w, b, *, grouped=None, block_rows=4096,
                               out_dtype=None):
    """a: (..., c_in), w: (c_in, c_out), b: (c_out,) -> (..., c_out)."""
    *lead, c_in = a.shape
    c_out = w.shape[1]
    M = math.prod(lead)
    out_dtype = a.dtype if out_dtype is None else out_dtype

    if grouped is not None and M % grouped[0] == 0:
        G, w_g, b_g = grouped                    # precomputed at param-init time
    else:
        # Pick a group size that divides M so no padding / epilogue slice is
        # ever needed (G=1 is the rare, correct, masked-store fallback).
        G = _preferred_group(c_in, c_out)
        while G > 1 and M % G != 0:
            G //= 2
        w_g, b_g = _group_params(w, b, G)

    Mg = M // G
    # Contiguous row-major reshape: pure metadata, no HBM pass.
    x = a.reshape(Mg, G * c_in)

    tile = min(block_rows, Mg)
    if Mg >= 16:
        # Guarantee >=2 grid steps so "parallel" row axis shards across v7x TCs.
        tile = min(tile, pl.cdiv(Mg, 2))
    tile = _round_up(max(tile, 1), 8)
    grid = (pl.cdiv(Mg, tile),)                  # partial last block handled by Pallas

    out = pl.pallas_call(
        _linear_kernel,
        out_shape=jax.ShapeDtypeStruct((Mg, G * c_out), out_dtype),
        grid=grid,
        in_specs=[
            pl.BlockSpec((tile, G * c_in), lambda r: (r, 0)),
            pl.BlockSpec((G * c_in, G * c_out), lambda r: (0, 0)),
            pl.BlockSpec((1, G * c_out), lambda r: (0, 0)),
        ],
        out_specs=pl.BlockSpec((tile, G * c_out), lambda r: (r, 0)),
        compiler_params=pltpu.CompilerParams(dimension_semantics=("parallel",)),
    )(x, w_g, b_g)

    # Pure metadata reshape (grouped rows are already in flat row-major order).
    return out.reshape(*lead, c_out)


# ----------------------------- params / reference ----------------------------


def init_params(key, c_in, c_out):
    """PyTorch nn.Linear init; weight stored pre-transposed as (c_in, c_out)."""
    kw, kb = jax.random.split(key)
    bound = 1.0 / math.sqrt(c_in)
    w = jax.random.uniform(kw, (c_in, c_out), jnp.float32, -bound, bound)
    b = jax.random.uniform(kb, (c_out,), jnp.float32, -bound, bound)
    return w, b


def reference_forward(a, w, b):
    return a @ w + b


# ----------------------------- main -------------------------------------------


if __name__ == "__main__":
    B, S, I = 2, 4, 16          # small extra-MSA stack: (batch, seqs, residues)
    c_in, c_out = 25, 64        # module defaults

    key = jax.random.PRNGKey(0)
    ka, kp = jax.random.split(key)
    a = jax.random.normal(ka, (B, S, I, c_in), jnp.float32)
    w, b = init_params(kp, c_in, c_out)

    # Build the grouped (block-diagonal) params once, outside the forward call.
    grouped = prepare_grouped_params(w, b)

    ref = reference_forward(a, w, b)

    # Exact-semantics path (f32 output, matches the PyTorch module).
    out = extra_msa_embedder_forward(a, w, b, grouped=grouped)
    jax.block_until_ready(out)
    assert out.shape == (B, S, I, c_out)
    assert out.dtype == jnp.float32
    assert jnp.allclose(out, ref, atol=1e-4, rtol=1e-4), "extra-MSA embed mismatch"

    # Reduced-writeback path (f32 accumulate, bf16 store) for bandwidth-bound use.
    out_bf16 = extra_msa_embedder_forward(a, w, b, grouped=grouped,
                                          out_dtype=jnp.bfloat16)
    jax.block_until_ready(out_bf16)
    assert out_bf16.dtype == jnp.bfloat16
    assert jnp.allclose(out_bf16.astype(jnp.float32), ref, atol=5e-2, rtol=5e-2), \
        "bf16 extra-MSA embed mismatch"

    print("KERNEL_OK")
</pallas_src>

<mosaic_0001>
module attributes {stable_mosaic.version = 11 : i64} {
  func.func @_linear_kernel(%arg0: i32, %arg1: memref<16x100xf32, #tpu.memory_space<vmem>>, %arg2: memref<100x256xf32, #tpu.memory_space<vmem>>, %arg3: memref<1x256xf32, #tpu.memory_space<vmem>>, %arg4: memref<16x256xf32, #tpu.memory_space<vmem>>) attributes {dimension_semantics = [#tpu.dimension_semantics<parallel>], iteration_bounds = array<i64: 2>, scalar_prefetch = 0 : i64, scratch_operands = 0 : i64, tpu.core_type = #tpu.core_type<tc>, window_params = [{transform_indices = @transform_0, window_bounds = array<i64: 16, 100>}, {pipeline_mode = #tpu.pipeline_mode<synchronous>, transform_indices = @transform_1, window_bounds = array<i64: 100, 256>}, {pipeline_mode = #tpu.pipeline_mode<synchronous>, transform_indices = @transform_2, window_bounds = array<i64: 1, 256>}, {transform_indices = @transform_3, window_bounds = array<i64: 16, 256>}]} {
    %c0 = arith.constant 0 : index
    %c0_0 = arith.constant 0 : index
    %0 = vector.load %arg1[%c0, %c0_0] : memref<16x100xf32, #tpu.memory_space<vmem>>, vector<16x100xf32>
    %c0_1 = arith.constant 0 : index
    %c0_2 = arith.constant 0 : index
    %1 = vector.load %arg2[%c0_1, %c0_2] : memref<100x256xf32, #tpu.memory_space<vmem>>, vector<100x256xf32>
    %cst = arith.constant dense<0.000000e+00> : vector<16x256xf32>
    %2 = tpu.matmul %0, %1, %cst {dimension_numbers = #tpu.dot_dimension_numbers<[1], [0], [0], [1], [0, 0, 1, 1], [], []>} : vector<16x100xf32>, vector<100x256xf32>, vector<16x256xf32> -> vector<16x256xf32>
    %c0_3 = arith.constant 0 : index
    %c0_4 = arith.constant 0 : index
    %3 = vector.load %arg3[%c0_3, %c0_4] : memref<1x256xf32, #tpu.memory_space<vmem>>, vector<1x256xf32>
    %4 = vector.broadcast %3 : vector<1x256xf32> to vector<16x256xf32>
    %5 = arith.addf %2, %4 : vector<16x256xf32>
    %c0_5 = arith.constant 0 : index
    %c0_6 = arith.constant 0 : index
    %6 = vector.load %arg4[%c0_5, %c0_6] : memref<16x256xf32, #tpu.memory_space<vmem>>, vector<16x256xf32>
    tpu.vector_store %arg4[%c0_5, %c0_6], %5 {strides = array<i32>} : memref<16x256xf32, #tpu.memory_space<vmem>>, vector<16x256xf32>,
    return
  }
  func.func @transform_0(%arg0: i32) -> (i32, i32) {
    %c0_i32 = arith.constant 0 : i32
    %c0_i32_0 = arith.constant 0 : i32
    return %arg0, %c0_i32 : i32, i32
  }
  func.func @transform_1(%arg0: i32) -> (i32, i32) {
    %c0_i32 = arith.constant 0 : i32
    %c0_i32_0 = arith.constant 0 : i32
    %c0_i32_1 = arith.constant 0 : i32
    return %c0_i32, %c0_i32_0 : i32, i32
  }
  func.func @transform_2(%arg0: i32) -> (i32, i32) {
    %c0_i32 = arith.constant 0 : i32
    %c0_i32_0 = arith.constant 0 : i32
    %c0_i32_1 = arith.constant 0 : i32
    return %c0_i32, %c0_i32_0 : i32, i32
  }
  func.func @transform_3(%arg0: i32) -> (i32, i32) {
    %c0_i32 = arith.constant 0 : i32
    %c0_i32_0 = arith.constant 0 : i32
    return %arg0, %c0_i32 : i32, i32
  }
}

</mosaic_0001>

<llo_original>
// kernel: tpu_custom_call.1
$region0: #{tpu_custom_call.1}
  #allocation0 [shape = 'u32[]', space=smem, size = 0x4, offset = 0x4, fixed_abs, tag = 'smem constant byte address 0x4 - core index']
  #allocation1 [shape = 'u32[144,128]{1,0:T(1,128)}', space=vmem, size = 0x12000, scoped, tag = 'internal scratch']
  %s0 = inlined_call_operand.hbm [shape: f32[32,100], index: 0, kind: input, shape index: {}]
  %s1 = inlined_call_operand.hbm [shape: f32[100,256], index: 1, kind: input, shape index: {}]
  %s2 = inlined_call_operand.vmem [shape: f32[1,256], index: 2, kind: input, shape index: {}]
  %s3 = inlined_call_operand.hbm [shape: f32[32,256], index: 3, kind: output, shape index: {}]
  %s4 = sld [smem:[#allocation0]]
  $region53: #{tpu_custom_call.1} parent=0
    _
  %s6 = ssub.s32 1, %s4
  %s7 = scalar_select 0, %s6, %s4
  $region1: #{tpu_custom_call.1} parent=0
    #allocation2 [shape = 'u8[16384]{0}', space=vmem, size = 0x4000, scoped, tag = 'input window, operand 0']
    #allocation3 [shape = 's32[2]{0}', space=sflag, size = 0x8, scoped, tag = 'scoped memory for tpu_custom_call.1']
    #allocation4 [shape = 's32[2]{0}', space=sflag, size = 0x8, scoped, tag = 'scoped memory for tpu_custom_call.1']
    #allocation5 [shape = 'u8[106496]{0}', space=vmem, size = 0x1a000, scoped, tag = 'input window, operand 1, single buffered']
    #allocation6 [shape = 's32[1]{0}', space=sflag, size = 0x4, scoped, tag = 'scoped memory for tpu_custom_call.1']
    #allocation7 [shape = 'u8[32768]{0}', space=vmem, size = 0x8000, scoped, tag = 'output window, operand 0']
    %8 = vsyncpa [#allocation3], 0
    %s9 = scalar_lea.sflag [#allocation3], 1
    %10 = vsyncpa %s9, 0
    %11 = vsyncpa [#allocation6], 0
    %12 = vsyncpa [#allocation4], 0
    %s13 = scalar_lea.sflag [#allocation4], 1
    %14 = vsyncpa %s13, 0
    loop: start=0, step=1, limit=4
    $region2: #{tpu_custom_call.1} parent=1 // loop_pre_header
      _
    $region3: #{tpu_custom_call.1} parent=1 // loop_header
      %s16 = sphi 0, %s20
      %p17 = scmp.ge.s32.totalorder %s16, 4
      %s26 = sphi 0, %s28
      %s29 = sphi 0, %s26
      %s30 = sphi 0, %s29
      %s46 = sphi 0, %s30
      %s50 = sphi 0, %s50
      %s52 = sphi 0, %s50
      %s53 = sphi 0, %s52
      %s67 = sphi 0, %s53
      %s71 = sphi 0, %s71
      %s73 = sphi 0, %s71
      %s74 = sphi 0, %s73
      %s88 = sphi 0, %s74
      %s94 = sphi 0, %s96
      %s97 = sphi 0, %s94
      %s98 = sphi 0, %s97
      %s114 = sphi 0, %s98
    $region4: #{tpu_custom_call.1} parent=1 // loop_header_branch
      %19 = sbr.rel (%p17) target = $region8
    $region5: #{tpu_custom_call.1} parent=1 // loop_body
      %s21 = ssub.s32 %s16, 1
      %s22 = ssub.s32 %s16, 2
      %s23 = sadd.s32 %s16, 1
      %s24 = ssub.s32 %s16, %s23
      %p25 = scmp.eq.s32.totalorder %s24, 0
      %s27 = sadd.s32 %s26, 1
      %s28 = scalar_select %p25, %s26, %s27
      %p31 = pneg %p25
      %p32 = scmp.eq.s32.totalorder %s16, 1
      %p33 = por %p31, %p32
      %p34 = scmp.ne.s32.totalorder %s26, %s29
      %p35 = scmp.eq.s32.totalorder %s16, 0
      %p36 = por %p34, %p35
      %p37 = scmp.ne.s32.totalorder %s26, %s29
      %p38 = scmp.eq.s32.totalorder %s21, 1
      %p39 = por %p37, %p38
      %p40 = scmp.ne.s32.totalorder %s29, %s30
      %p41 = scmp.eq.s32.totalorder %s21, 0
      %p42 = por %p40, %p41
      %p43 = scmp.ne.s32.totalorder %s29, %s30
      %p44 = scmp.eq.s32.totalorder %s22, 1
      %p45 = por %p43, %p44
      %p47 = scmp.ne.s32.totalorder %s30, %s46
      %p48 = scmp.eq.s32.totalorder %s22, 0
      %p49 = por %p47, %p48
      %s51 = sadd.s32 %s50, 1
      %p54 = scmp.eq.s32.totalorder %s16, 1
      %p55 = scmp.ne.s32.totalorder %s50, %s52
      %p56 = scmp.eq.s32.totalorder %s16, 0
      %p57 = por %p55, %p56
      %p58 = scmp.ne.s32.totalorder %s50, %s52
      %p59 = scmp.eq.s32.totalorder %s21, 1
      %p60 = por %p58, %p59
      %p61 = scmp.ne.s32.totalorder %s52, %s53
      %p62 = scmp.eq.s32.totalorder %s21, 0
      %p63 = por %p61, %p62
      %p64 = scmp.ne.s32.totalorder %s52, %s53
      %p65 = scmp.eq.s32.totalorder %s22, 1
      %p66 = por %p64, %p65
      %p68 = scmp.ne.s32.totalorder %s53, %s67
      %p69 = scmp.eq.s32.totalorder %s22, 0
      %p70 = por %p68, %p69
      %s72 = sadd.s32 %s71, 1
      %p75 = scmp.eq.s32.totalorder %s16, 1
      %p76 = scmp.ne.s32.totalorder %s71, %s73
      %p77 = scmp.eq.s32.totalorder %s16, 0
      %p78 = por %p76, %p77
      %p79 = scmp.ne.s32.totalorder %s71, %s73
      %p80 = scmp.eq.s32.totalorder %s21, 1
      %p81 = por %p79, %p80
      %p82 = scmp.ne.s32.totalorder %s73, %s74
      %p83 = scmp.eq.s32.totalorder %s21, 0
      %p84 = por %p82, %p83
      %p85 = scmp.ne.s32.totalorder %s73, %s74
      %p86 = scmp.eq.s32.totalorder %s22, 1
      %p87 = por %p85, %p86
      %p89 = scmp.ne.s32.totalorder %s74, %s88
      %p90 = scmp.eq.s32.totalorder %s22, 0
      %p91 = por %p89, %p90
      %s92 = ssub.s32 %s16, %s23
      %p93 = scmp.eq.s32.totalorder %s92, 0
      %s95 = sadd.s32 %s94, 1
      %s96 = scalar_select %p93, %s94, %s95
      %p99 = pneg %p93
      %p100 = scmp.eq.s32.totalorder %s16, 1
      %p101 = por %p99, %p100
      %p102 = scmp.ne.s32.totalorder %s94, %s97
      %p103 = scmp.eq.s32.totalorder %s16, 0
      %p104 = por %p102, %p103
      %p105 = scmp.ne.s32.totalorder %s94, %s97
      %p106 = scmp.eq.s32.totalorder %s21, 1
      %p107 = por %p105, %p106
      %p108 = scmp.ne.s32.totalorder %s97, %s98
      %p109 = scmp.eq.s32.totalorder %s21, 0
      %p110 = por %p108, %p109
      %p111 = scmp.ne.s32.totalorder %s97, %s98
      %p112 = scmp.eq.s32.totalorder %s22, 1
      %p113 = por %p111, %p112
      %p115 = scmp.ne.s32.totalorder %s98, %s114
      %p116 = scmp.eq.s32.totalorder %s22, 0
      %p117 = por %p115, %p116
      %p118 = scmp.le.s32.totalorder 1, %s16
      %p119 = scmp.lt.s32.totalorder %s16, 3
      %p120 = pnand %p118, %p119
      %p121 = pneg %p120
      // Predicated region
      $region9: #{tpu_custom_call.1} parent=5 // pred_check
        _
      $region10: #{tpu_custom_call.1} parent=5 // pred_check_branch
        %123 = sbr.rel (%p120) target = $region12
      $region11: #{tpu_custom_call.1} parent=5 // pred_region
        %s124 = ssub.s32 %s16, 1
        // Predicated region
        $region13: #{tpu_custom_call.1} parent=11 // pred_check
          %p125 = pneg %p63
        $region14: #{tpu_custom_call.1} parent=11 // pred_check_branch
          %127 = sbr.rel (%p125) target = $region16
        $region15: #{tpu_custom_call.1} parent=11 // pred_region
          %s129 = ssub.s32 3328, 3328
          %130 = vsyncadd [#allocation6], %s129
          %s131 = sshll.u32 [#allocation5], 4
          %s132 = int_to_ptr.vmem [resolvable:$true] %s131
          %137 = dma.hbm_to_vmem [thread:$0]  %s1, 3328, %s132, [#allocation6], 256, 256, 16
        $region16: #{tpu_custom_call.1} parent=11 // pred_fallthru
          _
        // Predicated region
        $region17: #{tpu_custom_call.1} parent=11 // pred_check
          %p138 = pneg %p84
        $region18: #{tpu_custom_call.1} parent=11 // pred_check_branch
          %140 = sbr.rel (%p138) target = $region20
        $region19: #{tpu_custom_call.1} parent=11 // pred_region
          _
        $region20: #{tpu_custom_call.1} parent=11 // pred_fallthru
          _
      $region12: #{tpu_custom_call.1} parent=5 // pred_fallthru
        _
      %p141 = scmp.lt.s32.totalorder %s16, 2
      // Predicated region
      $region21: #{tpu_custom_call.1} parent=5 // pred_check
        %p142 = pneg %p141
      $region22: #{tpu_custom_call.1} parent=5 // pred_check_branch
        %144 = sbr.rel (%p142) target = $region24
      $region23: #{tpu_custom_call.1} parent=5 // pred_region
        // Predicated region
        $region25: #{tpu_custom_call.1} parent=23 // pred_check
          %p145 = pneg %p36
        $region26: #{tpu_custom_call.1} parent=23 // pred_check_branch
          %147 = sbr.rel (%p145) target = $region28
        $region27: #{tpu_custom_call.1} parent=23 // pred_region
          %s148 = sand.u32 %s26, 1
          %s149 = scalar_lea.sflag [#allocation3], %s148
          %s150 = sand.u32 %s26, 1
          %s151 = smul.addr %s150, 16
          %s152 = scalar_lea.vmem [#allocation2], %s151
          %s153 = smul.u32 2, %s16
          %s155 = ssub.s32 256, 256
          %156 = vsyncadd %s149, %s155
          %s157 = smul.addr %s153, 128
          %s158 = scalar_lea.hbm %s0, %s157
          %s159 = sshll.u32 %s152, 4
          %s160 = int_to_ptr.vmem [resolvable:$true] %s159
          %165 = dma.hbm_to_vmem [thread:$0]  %s158, 256, %s160, %s149, 128, 128, 8
        $region28: #{tpu_custom_call.1} parent=23 // pred_fallthru
          _
      $region24: #{tpu_custom_call.1} parent=5 // pred_fallthru
        _
      %p166 = scmp.le.s32.totalorder 1, %s16
      %p167 = scmp.lt.s32.totalorder %s16, 3
      %p168 = pnand %p166, %p167
      %p169 = pneg %p168
      // Predicated region
      $region29: #{tpu_custom_call.1} parent=5 // pred_check
        _
      $region30: #{tpu_custom_call.1} parent=5 // pred_check_branch
        %171 = sbr.rel (%p168) target = $region32
      $region31: #{tpu_custom_call.1} parent=5 // pred_region
        %s172 = ssub.s32 %s16, 1
        %s173 = sand.u32 %s29, 1
        %s174 = scalar_lea.sflag [#allocation3], %s173
        %s175 = sand.u32 %s29, 1
        %s176 = smul.addr %s175, 16
        %s177 = scalar_lea.vmem [#allocation2], %s176
        // Predicated region
        $region33: #{tpu_custom_call.1} parent=31 // pred_check
          %p178 = pneg %p42
        $region34: #{tpu_custom_call.1} parent=31 // pred_check_branch
          %180 = sbr.rel (%p178) target = $region36
        $region35: #{tpu_custom_call.1} parent=31 // pred_region
          %181 = dma.done %s174, 256
        $region36: #{tpu_custom_call.1} parent=31 // pred_fallthru
          _
        // Predicated region
        $region37: #{tpu_custom_call.1} parent=31 // pred_check
          %p182 = pneg %p63
        $region38: #{tpu_custom_call.1} parent=31 // pred_check_branch
          %184 = sbr.rel (%p182) target = $region40
        $region39: #{tpu_custom_call.1} parent=31 // pred_region
          %185 = dma.done [#allocation6], 3328
        $region40: #{tpu_custom_call.1} parent=31 // pred_fallthru
          _
        %s186 = sand.u32 %s29, 1
        %s187 = scalar_lea.sflag [#allocation3], %s186
        %s188 = sand.u32 %s29, 1
        %s189 = smul.addr %s188, 16
        %s190 = scalar_lea.vmem [#allocation2], %s189
        %p191 = pneg %p42
        %p192 = pneg %p39
        %p193 = pneg %p63
        %p194 = pneg %p60
        %p195 = pneg %p84
        %p196 = pneg %p81
        %p197 = pneg %p110
        %p198 = pneg %p107
        %s199 = sand.u32 %s97, 1
        %s200 = scalar_lea.sflag [#allocation4], %s199
        %s201 = sand.u32 %s97, 1
        %s202 = smul.addr %s201, 32
        %s203 = scalar_lea.vmem [#allocation7], %s202
        %s204 = smul.u32 2, %s21
        %s205 = smul.u32 2, %s21
        %v206 = vld [vmem:[%s177] sm:$0xff]
        %v207 = vld [vmem:[%s177 + $0x8] sm:$0xff]
        %v208 = vld [vmem:[#allocation5] sm:$0xff]
        %v209 = vld [vmem:[#allocation5 + $0x8] sm:$0xff]
        %v210 = vld [vmem:[#allocation5 + $0x10] sm:$0xff]
        %v211 = vld [vmem:[#allocation5 + $0x18] sm:$0xff]
        %v212 = vld [vmem:[#allocation5 + $0x20] sm:$0xff]
        %v213 = vld [vmem:[#allocation5 + $0x28] sm:$0xff]
        %v214 = vld [vmem:[#allocation5 + $0x30] sm:$0xff]
        %v215 = vld [vmem:[#allocation5 + $0x38] sm:$0xff]
        %v216 = vld [vmem:[#allocation5 + $0x40] sm:$0xff]
        %v217 = vld [vmem:[#allocation5 + $0x48] sm:$0xff]
        %v218 = vld [vmem:[#allocation5 + $0x50] sm:$0xff]
        %v219 = vld [vmem:[#allocation5 + $0x58] sm:$0xff]
        %v220 = vld [vmem:[#allocation5 + $0x60] sm:$0xff]
        %v221 = vld [vmem:[#allocation5 + $0x68] sm:$0xff]
        %v222 = vld [vmem:[#allocation5 + $0x70] sm:$0xff]
        %v223 = vld [vmem:[#allocation5 + $0x78] sm:$0xff]
        %v224 = vld [vmem:[#allocation5 + $0x80] sm:$0xff]
        %v225 = vld [vmem:[#allocation5 + $0x88] sm:$0xff]
        %v226 = vld [vmem:[#allocation5 + $0x90] sm:$0xff]
        %v227 = vld [vmem:[#allocation5 + $0x98] sm:$0xff]
        %v228 = vld [vmem:[#allocation5 + $0xa0] sm:$0xff]
        %v229 = vld [vmem:[#allocation5 + $0xa8] sm:$0xff]
        %v230 = vld [vmem:[#allocation5 + $0xb0] sm:$0xff]
        %v231 = vld [vmem:[#allocation5 + $0xb8] sm:$0xff]
        %v232 = vld [vmem:[#allocation5 + $0xc0] sm:$0xf]
        %v233 = vld [vmem:[#allocation5 + $0xc8] sm:$0xf]
        %v234 = vld [vmem:[%s2] sm:$0x3]
        %v236 = vlaneseq
        %v237 = vshrl.u32 %v236, 7
        %v238 = vsub.s32 0, %v237
        %v239 = vrot.slane %v234, %v238
        %v240 = vlaneseq
        %v241 = vshrl.u32 %v240, 7
        %v242 = vsub.s32 1, %v241
        %v243 = vrot.slane %v234, %v242
        %vm246 = vcmask 818176
        %v248 = vsel %vm246, %v206, 0
        %v251 = vsel %vm246, %v207, 0
        %vm253 = vcmask 1043456
        %v255 = vsel %vm253, %v232, 0
        %v258 = vsel %vm253, %v233, 0
        %260 = vmatprep.subr.mxu0 %v209
        %261 = vmatpush1.msra.mxu0 %v208
        %262 = vmatprep.subr.mxu0 %v211
        %263 = vmatpush1.msra.mxu0 %v210
        %264 = vmatprep.subr.mxu0 %v213
        %265 = vmatpush1.msra.mxu0 %v212
        %266 = vmatprep.subr.mxu0 %v215
        %267 = vmatpush1.msra.mxu0 %v214
        %268 = vmatprep.subr.mxu0 %v217
        %269 = vmatpush1.msra.mxu0 %v216
        %270 = vmatprep.subr.mxu0 %v219
        %271 = vmatpush1.msra.mxu0 %v218
        %272 = vmatprep.subr.mxu0 %v221
        %273 = vmatpush1.msra.mxu0 %v220
        %274 = vmatprep.subr.mxu0 %v223
        %275 = vmatpush1.msra.mxu0 %v222
        %276 = vmatprep.subr.mxu0 %v225
        %277 = vmatpush1.msra.mxu0 %v224
        %278 = vmatprep.subr.mxu0 %v227
        %279 = vmatpush1.msra.mxu0 %v226
        %280 = vmatprep.subr.mxu0 %v229
        %281 = vmatpush1.msra.mxu0 %v228
        %282 = vmatprep.subr.mxu0 %v231
        %283 = vmatpush1.msra.mxu0 %v230
        %284 = vmatprep.subr.mxu0 %v258
        %285 = vmatpush1.msra.mxu0 %v255
        %286 = vmatprep.subr.mxu0 0.0
        %287 = vmatpush1.msra.mxu0 0.0
        %288 = vmatprep.subr.mxu0 0.0
        %289 = vmatpush1.msra.mxu0 0.0
        %290 = vmatprep.subr.mxu0 0.0
        %291 = vmatpush1.msra.mxu0 0.0
        %292 = vmatprep.subr.mxu0 0.0
        %293 = vmatpush1.msra.mxu0 0.0
        %294 = vmatprep.subr.mxu0 0.0
        %295 = vmatpush1.msra.mxu0 0.0
        %296 = vmatprep.subr.mxu0 0.0
        %297 = vmatpush1.msra.mxu0 0.0
        %298 = vmatprep.subr.mxu0 0.0
        %299 = vmatpush1.msra.mxu0 0.0
        %300 = vmatprep.subr.mxu0 0.0
        %301 = vmatpush1.msra.mxu0 0.0
        %302 = vmatprep.subr.mxu0 0.0
        %303 = vmatpush1.msra.mxu0 0.0
        %304 = vmatprep.subr.mxu0 0.0
        %305 = vmatpush1.msra.mxu0 0.0
        %306 = vmatprep.subr.mxu0 0.0
        %307 = vmatpush1.msra.mxu0 0.0
        %308 = vmatprep.subr.mxu0 0.0
        %309 = vmatpush1.msra.mxu0 0.0
        %310 = vmatprep.subr.mxu0 0.0
        %311 = vmatpush1.msra.mxu0 0.0
        %312 = vmatprep.subr.mxu0 0.0
        %313 = vmatpush1.msra.mxu0 0.0
        %314 = vmatprep.subr.mxu0 0.0
        %315 = vmatpush1.msra.mxu0 0.0
        %316 = vmatprep.subr.mxu0 0.0
        %317 = vmatpush1.msra.mxu0 0.0
        %318 = vmatprep.subr.mxu0 0.0
        %319 = vmatpush1.msra.mxu0 0.0
        %320 = vmatprep.subr.mxu0 0.0
        %321 = vmatpush1.msra.mxu0 0.0
        %322 = vmatprep.subr.mxu0 0.0
        %323 = vmatpush1.msra.mxu0 0.0
        %324 = vmatprep.mubr.f32.mxu0 0.0
        %325 = vmatmul.mubr.f32.gmra.mrb[0].mxu0 %v248
        %v326 = vpop.f32.mrb[0].mxu0
        %v327 = vadd.f32 %v239, %v326
        %v328 = vpop.f32.mrb[0].mxu0
        %v329 = vadd.f32 %v243, %v328
        %330 = vmatprep.mubr.f32.mxu0 0.0
        %331 = vmatmul.mubr.f32.gmra.mrb[0].mxu0 %v251
        %v332 = vpop.f32.mrb[0].mxu0
        %v333 = vadd.f32 %v239, %v332
        %v334 = vpop.f32.mrb[0].mxu0
        %v335 = vadd.f32 %v243, %v334
        %336 = vdwg.mxu0
        %337 = vst [vmem:[%s203] sm:$0xff] %v327
        %338 = vst [vmem:[%s203 + $0x8] sm:$0xff] %v329
        %339 = vst [vmem:[%s203 + $0x10] sm:$0xff] %v333
        %340 = vst [vmem:[%s203 + $0x18] sm:$0xff] %v335
        %s341 = sand.u32 %s97, 1
        %s342 = scalar_lea.sflag [#allocation4], %s341
        %s343 = sand.u32 %s97, 1
        %s344 = smul.addr %s343, 32
        %s345 = scalar_lea.vmem [#allocation7], %s344
        // Predicated region
        $region41: #{tpu_custom_call.1} parent=31 // pred_check
          %p346 = pneg %p107
        $region42: #{tpu_custom_call.1} parent=31 // pred_check_branch
          %348 = sbr.rel (%p346) target = $region44
        $region43: #{tpu_custom_call.1} parent=31 // pred_region
          %s349 = smul.u32 2, %s21
          %s351 = ssub.s32 512, 512
          %352 = vsyncadd %s342, %s351
          %s353 = smul.addr %s349, 2
          %s354 = smul.addr %s353, 128
          %s355 = scalar_lea.hbm %s3, %s354
          %s356 = sshll.u32 %s345, 4
          %s357 = int_to_ptr.vmem [resolvable:$true] %s356
          %362 = dma.vmem_to_hbm [thread:$0]  %s357, 512, %s355, %s342, 256, 256, 16
        $region44: #{tpu_custom_call.1} parent=31 // pred_fallthru
          _
      $region32: #{tpu_custom_call.1} parent=5 // pred_fallthru
        _
      %p363 = scmp.le.s32.totalorder 2, %s16
      // Predicated region
      $region45: #{tpu_custom_call.1} parent=5 // pred_check
        %p364 = pneg %p363
      $region46: #{tpu_custom_call.1} parent=5 // pred_check_branch
        %366 = sbr.rel (%p364) target = $region48
      $region47: #{tpu_custom_call.1} parent=5 // pred_region
        %s367 = ssub.s32 %s16, 2
        // Predicated region
        $region49: #{tpu_custom_call.1} parent=47 // pred_check
          %p368 = pneg %p113
        $region50: #{tpu_custom_call.1} parent=47 // pred_check_branch
          %370 = sbr.rel (%p368) target = $region52
        $region51: #{tpu_custom_call.1} parent=47 // pred_region
          %s371 = sand.u32 %s98, 1
          %s372 = scalar_lea.sflag [#allocation4], %s371
          %s373 = sand.u32 %s98, 1
          %s374 = smul.addr %s373, 32
          %s375 = scalar_lea.vmem [#allocation7], %s374
          %376 = dma.done %s372, 512
        $region52: #{tpu_custom_call.1} parent=47 // pred_fallthru
          _
      $region48: #{tpu_custom_call.1} parent=5 // pred_fallthru
        _
    $region6: #{tpu_custom_call.1} parent=1 // loop_footer
      %s20 = sadd.s32 1, %s16
    $region7: #{tpu_custom_call.1} parent=1 // loop_footer_branch
      %15 = sbr.rel target = $region3
    $region8: #{tpu_custom_call.1} parent=1 // loop_exit
      _
    %377 = vsyncpa [#allocation3], 1
    %s378 = scalar_lea.sflag [#allocation3], 1
    %379 = vsyncpa %s378, 1
    %380 = vsyncpa [#allocation6], 1
    %381 = vsyncpa [#allocation4], 1
    %s382 = scalar_lea.sflag [#allocation4], 1
    %383 = vsyncpa %s382, 1

</llo_original>
